<compile_context>
chip_gen: v7x
topology: tpu7x:2x2x1
jax: 0.10.0
libtpu: 0.0.40
codegen_flags: <defaults>
</compile_context>

<pallas_src>
import functools

import jax
import jax.numpy as jnp
from jax.experimental import pallas as pl
from jax.experimental.pallas import tpu as pltpu  # noqa: F401  (kept for future tiling params)

LANE = 128


def _round_up(n, m):
    return ((n + m - 1) // m) * m


# ----------------------------------------------------------------------------
# Fused kernel (single grid step, whole arrays resident in VMEM):
#   patches -> conv matmul -> bias+ReLU -> mean-pool matmul -> h
#   h -> Linear -> ReLU -> Linear -> z
# Both views are stacked along the row dim, so one MXU pass covers x_i and x_j.
# ----------------------------------------------------------------------------
def fused_kernel(p_ref, pool_ref, wc_ref, bc_ref, w1_ref, b1_ref, w2_ref,
                 b2_ref, h_ref, z_ref):
    # Conv1d as im2col matmul: (2B*L_out, KCp) @ (KCp, Fp), bf16 in / f32 acc.
    conv = jnp.dot(p_ref[...], wc_ref[...], preferred_element_type=jnp.float32)
    conv = jnp.maximum(conv + bc_ref[...], 0.0)                      # bias + ReLU
    # Global average pool as a constant matmul; 1/L_out baked into pool.
    h = jnp.dot(pool_ref[...], conv, preferred_element_type=jnp.float32)  # (2B, Fp)
    h_ref[...] = h
    # Projector: Linear(F -> F/2) -> ReLU -> Linear(F/2 -> P); pads stay zero.
    y = jnp.maximum(
        jnp.dot(h.astype(jnp.bfloat16), w1_ref[...],
                preferred_element_type=jnp.float32) + b1_ref[...], 0.0)
    z_ref[...] = jnp.dot(y.astype(jnp.bfloat16), w2_ref[...],
                         preferred_element_type=jnp.float32) + b2_ref[...]


# ----------------------------------------------------------------------------
# One-time parameter layout prep: (out,in)->(in,out) transposes, conv slab,
# pool matrix, contraction pads to 8/32, output-lane pads to 128, bf16 casts.
# ----------------------------------------------------------------------------
def prepare_params(params, B, L):
    conv_w, conv_b = params["conv_w"], params["conv_b"]    # (F, C, K), (F,)
    w1, b1 = params["w1"], params["b1"]                    # (H, F), (H,)
    w2, b2 = params["w2"], params["b2"]                    # (P, H), (P,)
    F, C, K = conv_w.shape
    H = w1.shape[0]
    P = w2.shape[0]
    KC = K * C
    L_out = L - K + 1

    KCp = _round_up(KC, 32)          # contraction pad only (was 128)
    Hp = _round_up(H, 8)             # contraction pad only (was 128)
    Fp = _round_up(F, LANE)          # output lanes stay 128-dense
    Pp = _round_up(P, LANE)          # output lanes stay 128-dense

    # Conv weight slab: (K*C, F), row index = k*C + c (matches im2col columns).
    wc = jnp.transpose(conv_w, (2, 1, 0)).reshape(KC, F)
    wc = jnp.pad(wc, ((0, KCp - KC), (0, Fp - F))).astype(jnp.bfloat16)
    bc = jnp.pad(conv_b.reshape(1, F), ((0, 0), (0, Fp - F)))
    w1p = jnp.pad(w1.T, ((0, Fp - F), (0, Hp - H))).astype(jnp.bfloat16)   # (Fp, Hp)
    b1p = jnp.pad(b1.reshape(1, H), ((0, 0), (0, Hp - H)))
    w2p = jnp.pad(w2.T, ((0, Hp - H), (0, Pp - P))).astype(jnp.bfloat16)   # (Hp, Pp)
    b2p = jnp.pad(b2.reshape(1, P), ((0, 0), (0, Pp - P)))

    # Mean-pool matrix over the stacked (view, batch) rows:
    # pool[v*B + b, (v*B + b)*L_out + t] = 1/L_out.
    pool = jnp.repeat(jnp.eye(2 * B, dtype=jnp.float32), L_out, axis=1) / float(L_out)

    return dict(wc=wc, bc=bc, w1=w1p, b1=b1p, w2=w2p, b2=b2p, pool=pool,
                K=K, C=C, F=F, H=H, P=P,
                KC=KC, KCp=KCp, Fp=Fp, Hp=Hp, Pp=Pp)


# ----------------------------------------------------------------------------
# Forward: one fused, grid-less pallas_call covering both views.
# ----------------------------------------------------------------------------
def simclr_encoder_forward(x_i, x_j, prep):
    """x_i, x_j: (B, C, L) NCL like PyTorch.  Returns (h_i, h_j, z_i, z_j)."""
    B, C, L = x_i.shape
    K, F, P = prep["K"], prep["F"], prep["P"]
    KC, KCp, Fp, Pp = prep["KC"], prep["KCp"], prep["Fp"], prep["Pp"]
    L_out = L - K + 1
    BL2 = 2 * B * L_out

    # Stack both views along the row dim so a single kernel step covers both.
    x = jnp.stack([x_i, x_j], axis=0)                   # (2, B, C, L)
    x = jnp.transpose(x, (0, 1, 3, 2))                  # (2, B, L, C)
    # im2col: (2, B, L_out, K, C) -> (2B*L_out, K*C), contraction-padded to KCp.
    patches = jnp.stack([x[:, :, k:k + L_out, :] for k in range(K)], axis=3)
    patches = patches.reshape(BL2, KC)
    patches = jnp.pad(patches, ((0, 0), (0, KCp - KC))).astype(jnp.bfloat16)

    h_pad, z_pad = pl.pallas_call(
        fused_kernel,
        out_shape=[
            jax.ShapeDtypeStruct((2 * B, Fp), jnp.float32),   # h (lane-dense)
            jax.ShapeDtypeStruct((2 * B, Pp), jnp.float32),   # z (lane-dense)
        ],
    )(patches, prep["pool"], prep["wc"], prep["bc"], prep["w1"], prep["b1"],
      prep["w2"], prep["b2"])

    h_i, h_j = h_pad[:B, :F], h_pad[B:, :F]
    z_i, z_j = z_pad[:B, :P], z_pad[B:, :P]
    return h_i, h_j, z_i, z_j


# ----------------------------------------------------------------------------
# Pure-JAX reference (same semantics) for a numerical sanity check.
# ----------------------------------------------------------------------------
def reference_forward(x_i, x_j, params):
    w, b = params["conv_w"], params["conv_b"]
    F, _, K = w.shape

    def enc(x):
        B, C, L = x.shape
        L_out = L - K + 1
        cols = jnp.stack([x[:, :, k:k + L_out] for k in range(K)], axis=-1)  # (B,C,L_out,K)
        y = jnp.einsum("bclk,fck->blf", cols, w) + b
        y = jnp.maximum(y, 0.0)
        return jnp.mean(y, axis=1)

    def proj(h):
        y = jnp.maximum(h @ params["w1"].T + params["b1"], 0.0)
        return y @ params["w2"].T + params["b2"]

    h_i, h_j = enc(x_i), enc(x_j)
    return h_i, h_j, proj(h_i), proj(h_j)


# ----------------------------------------------------------------------------
# Main
# ----------------------------------------------------------------------------
if __name__ == "__main__":
    # args: n_channel=4, base_filters=32, kernel_size=5, n_block=1,
    #       increasefilter_gap=1  ->  n_features = 32; projection_dim = 8
    B, C_in, L = 2, 4, 16
    K, F = 5, 32
    hidden = F // 2            # int(n_features / 2) = 16
    proj_dim = 8

    key = jax.random.PRNGKey(0)
    ks = jax.random.split(key, 8)

    params = {
        "conv_w": jax.random.normal(ks[0], (F, C_in, K), jnp.float32) * 0.1,
        "conv_b": jax.random.normal(ks[1], (F,), jnp.float32) * 0.1,
        "w1": jax.random.normal(ks[2], (hidden, F), jnp.float32) * 0.1,
        "b1": jax.random.normal(ks[3], (hidden,), jnp.float32) * 0.1,
        "w2": jax.random.normal(ks[4], (proj_dim, hidden), jnp.float32) * 0.1,
        "b2": jax.random.normal(ks[5], (proj_dim,), jnp.float32) * 0.1,
    }

    x_i = jax.random.normal(ks[6], (B, C_in, L), jnp.float32)
    x_j = jax.random.normal(ks[7], (B, C_in, L), jnp.float32)

    prep = prepare_params(params, B, L)
    forward = jax.jit(functools.partial(simclr_encoder_forward, prep=prep))

    h_i, h_j, z_i, z_j = forward(x_i, x_j)
    jax.block_until_ready((h_i, h_j, z_i, z_j))

    assert h_i.shape == (B, F) and h_j.shape == (B, F)
    assert z_i.shape == (B, proj_dim) and z_j.shape == (B, proj_dim)

    refs = reference_forward(x_i, x_j, params)
    for got, want in zip((h_i, h_j, z_i, z_j), refs):
        # bf16 matmul operands with f32 accumulation -> 2e-2 tolerance.
        assert jnp.allclose(got, want, atol=2e-2, rtol=2e-2), "mismatch vs reference"

    print("KERNEL_OK")
</pallas_src>

<mosaic_0001>
module attributes {stable_mosaic.version = 11 : i64} {
  func.func @fused_kernel(%arg0: memref<48x32xbf16, #tpu.memory_space<vmem>>, %arg1: memref<4x48xf32, #tpu.memory_space<vmem>>, %arg2: memref<32x128xbf16, #tpu.memory_space<vmem>>, %arg3: memref<1x128xf32, #tpu.memory_space<vmem>>, %arg4: memref<128x16xbf16, #tpu.memory_space<vmem>>, %arg5: memref<1x16xf32, #tpu.memory_space<vmem>>, %arg6: memref<16x128xbf16, #tpu.memory_space<vmem>>, %arg7: memref<1x128xf32, #tpu.memory_space<vmem>>, %arg8: memref<4x128xf32, #tpu.memory_space<vmem>>, %arg9: memref<4x128xf32, #tpu.memory_space<vmem>>) attributes {dimension_semantics = [], scalar_prefetch = 0 : i64, scratch_operands = 0 : i64, tpu.core_type = #tpu.core_type<tc>} {
    %c0 = arith.constant 0 : index
    %c0_0 = arith.constant 0 : index
    %0 = vector.load %arg0[%c0, %c0_0] : memref<48x32xbf16, #tpu.memory_space<vmem>>, vector<48x32xbf16>
    %c0_1 = arith.constant 0 : index
    %c0_2 = arith.constant 0 : index
    %1 = vector.load %arg2[%c0_1, %c0_2] : memref<32x128xbf16, #tpu.memory_space<vmem>>, vector<32x128xbf16>
    %cst = arith.constant dense<0.000000e+00> : vector<48x128xf32>
    %2 = tpu.matmul %0, %1, %cst {dimension_numbers = #tpu.dot_dimension_numbers<[1], [0], [0], [1], [0, 0, 1, 1], [], []>} : vector<48x32xbf16>, vector<32x128xbf16>, vector<48x128xf32> -> vector<48x128xf32>
    %c0_3 = arith.constant 0 : index
    %c0_4 = arith.constant 0 : index
    %3 = vector.load %arg3[%c0_3, %c0_4] : memref<1x128xf32, #tpu.memory_space<vmem>>, vector<1x128xf32>
    %4 = vector.broadcast %3 : vector<1x128xf32> to vector<48x128xf32>
    %5 = arith.addf %2, %4 : vector<48x128xf32>
    %cst_5 = arith.constant 0.000000e+00 : f32
    %6 = vector.broadcast %cst_5 : f32 to vector<48x128xf32>
    %7 = arith.maximumf %5, %6 : vector<48x128xf32>
    %c0_6 = arith.constant 0 : index
    %c0_7 = arith.constant 0 : index
    %8 = vector.load %arg1[%c0_6, %c0_7] : memref<4x48xf32, #tpu.memory_space<vmem>>, vector<4x48xf32>
    %cst_8 = arith.constant dense<0.000000e+00> : vector<4x128xf32>
    %9 = tpu.matmul %8, %7, %cst_8 {dimension_numbers = #tpu.dot_dimension_numbers<[1], [0], [0], [1], [0, 0, 1, 1], [], []>} : vector<4x48xf32>, vector<48x128xf32>, vector<4x128xf32> -> vector<4x128xf32>
    %c0_9 = arith.constant 0 : index
    %c0_10 = arith.constant 0 : index
    %10 = vector.load %arg8[%c0_9, %c0_10] : memref<4x128xf32, #tpu.memory_space<vmem>>, vector<4x128xf32>
    tpu.vector_store %arg8[%c0_9, %c0_10], %9 {strides = array<i32>} : memref<4x128xf32, #tpu.memory_space<vmem>>, vector<4x128xf32>,
    %11 = arith.truncf %9 : vector<4x128xf32> to vector<4x128xbf16>
    %c0_11 = arith.constant 0 : index
    %c0_12 = arith.constant 0 : index
    %12 = vector.load %arg4[%c0_11, %c0_12] : memref<128x16xbf16, #tpu.memory_space<vmem>>, vector<128x16xbf16>
    %cst_13 = arith.constant dense<0.000000e+00> : vector<4x16xf32>
    %13 = tpu.matmul %11, %12, %cst_13 {dimension_numbers = #tpu.dot_dimension_numbers<[1], [0], [0], [1], [0, 0, 1, 1], [], []>} : vector<4x128xbf16>, vector<128x16xbf16>, vector<4x16xf32> -> vector<4x16xf32>
    %c0_14 = arith.constant 0 : index
    %c0_15 = arith.constant 0 : index
    %14 = vector.load %arg5[%c0_14, %c0_15] : memref<1x16xf32, #tpu.memory_space<vmem>>, vector<1x16xf32>
    %15 = vector.broadcast %14 : vector<1x16xf32> to vector<4x16xf32>
    %16 = arith.addf %13, %15 : vector<4x16xf32>
    %cst_16 = arith.constant 0.000000e+00 : f32
    %17 = vector.broadcast %cst_16 : f32 to vector<4x16xf32>
    %18 = arith.maximumf %16, %17 : vector<4x16xf32>
    %19 = arith.truncf %18 : vector<4x16xf32> to vector<4x16xbf16>
    %c0_17 = arith.constant 0 : index
    %c0_18 = arith.constant 0 : index
    %20 = vector.load %arg6[%c0_17, %c0_18] : memref<16x128xbf16, #tpu.memory_space<vmem>>, vector<16x128xbf16>
    %cst_19 = arith.constant dense<0.000000e+00> : vector<4x128xf32>
    %21 = tpu.matmul %19, %20, %cst_19 {dimension_numbers = #tpu.dot_dimension_numbers<[1], [0], [0], [1], [0, 0, 1, 1], [], []>} : vector<4x16xbf16>, vector<16x128xbf16>, vector<4x128xf32> -> vector<4x128xf32>
    %c0_20 = arith.constant 0 : index
    %c0_21 = arith.constant 0 : index
    %22 = vector.load %arg7[%c0_20, %c0_21] : memref<1x128xf32, #tpu.memory_space<vmem>>, vector<1x128xf32>
    %23 = vector.broadcast %22 : vector<1x128xf32> to vector<4x128xf32>
    %24 = arith.addf %21, %23 : vector<4x128xf32>
    %c0_22 = arith.constant 0 : index
    %c0_23 = arith.constant 0 : index
    %25 = vector.load %arg9[%c0_22, %c0_23] : memref<4x128xf32, #tpu.memory_space<vmem>>, vector<4x128xf32>
    tpu.vector_store %arg9[%c0_22, %c0_23], %24 {strides = array<i32>} : memref<4x128xf32, #tpu.memory_space<vmem>>, vector<4x128xf32>,
    return
  }
}

</mosaic_0001>

<llo_original>
// kernel: simclr_encoder_forward.1
$region0: #{simclr_encoder_forward.1}
  #allocation0 [shape = 'u32[]', space=smem, size = 0x4, offset = 0x4, fixed_abs, tag = 'smem constant byte address 0x4 - core index']
  #allocation1 [shape = 'u32[144,128]{1,0:T(1,128)}', space=vmem, size = 0x12000, scoped, tag = 'internal scratch']
  %s0 = inlined_call_operand.vmem [shape: bf16[48,32], index: 0, kind: input, shape index: {}]
  %s1 = inlined_call_operand.vmem [shape: f32[4,48], index: 1, kind: input, shape index: {}]
  %s2 = inlined_call_operand.vmem [shape: bf16[32,128], index: 2, kind: input, shape index: {}]
  %s3 = inlined_call_operand.vmem [shape: f32[1,128], index: 3, kind: input, shape index: {}]
  %s4 = inlined_call_operand.vmem [shape: bf16[128,16], index: 4, kind: input, shape index: {}]
  %s5 = inlined_call_operand.vmem [shape: f32[1,16], index: 5, kind: input, shape index: {}]
  %s6 = inlined_call_operand.vmem [shape: bf16[16,128], index: 6, kind: input, shape index: {}]
  %s7 = inlined_call_operand.vmem [shape: f32[1,128], index: 7, kind: input, shape index: {}]
  %s8 = inlined_call_operand.vmem [shape: f32[4,128], index: 8, kind: output, shape index: {0}]
  %s9 = inlined_call_operand.vmem [shape: f32[4,128], index: 9, kind: output, shape index: {1}]
  %10 = xla_tuple %s8, %s9
  %s11 = sld [smem:[#allocation0]]
  $region50: #{simclr_encoder_forward.1} parent=0
    _
  %s13 = ssub.s32 1, %s11
  %s14 = scalar_select 0, %s13, %s11
  // Predicated region
  $region2: #{simclr_encoder_forward.1} parent=0 // pred_check
    _
  $region3: #{simclr_encoder_forward.1} parent=0 // pred_check_branch
    %16 = sbr.rel (0) target = $region5
  $region4: #{simclr_encoder_forward.1} parent=0 // pred_region
    _
  $region5: #{simclr_encoder_forward.1} parent=0 // pred_fallthru
    _
  // Predicated region
  $region6: #{simclr_encoder_forward.1} parent=0 // pred_check
    _
  $region7: #{simclr_encoder_forward.1} parent=0 // pred_check_branch
    %18 = sbr.rel (0) target = $region9
  $region8: #{simclr_encoder_forward.1} parent=0 // pred_region
    _
  $region9: #{simclr_encoder_forward.1} parent=0 // pred_fallthru
    _
  // Predicated region
  $region10: #{simclr_encoder_forward.1} parent=0 // pred_check
    _
  $region11: #{simclr_encoder_forward.1} parent=0 // pred_check_branch
    %20 = sbr.rel (0) target = $region13
  $region12: #{simclr_encoder_forward.1} parent=0 // pred_region
    _
  $region13: #{simclr_encoder_forward.1} parent=0 // pred_fallthru
    _
  // Predicated region
  $region14: #{simclr_encoder_forward.1} parent=0 // pred_check
    _
  $region15: #{simclr_encoder_forward.1} parent=0 // pred_check_branch
    %22 = sbr.rel (0) target = $region17
  $region16: #{simclr_encoder_forward.1} parent=0 // pred_region
    _
  $region17: #{simclr_encoder_forward.1} parent=0 // pred_fallthru
    _
  // Predicated region
  $region18: #{simclr_encoder_forward.1} parent=0 // pred_check
    _
  $region19: #{simclr_encoder_forward.1} parent=0 // pred_check_branch
    %24 = sbr.rel (0) target = $region21
  $region20: #{simclr_encoder_forward.1} parent=0 // pred_region
    _
  $region21: #{simclr_encoder_forward.1} parent=0 // pred_fallthru
    _
  // Predicated region
  $region22: #{simclr_encoder_forward.1} parent=0 // pred_check
    _
  $region23: #{simclr_encoder_forward.1} parent=0 // pred_check_branch
    %26 = sbr.rel (0) target = $region25
  $region24: #{simclr_encoder_forward.1} parent=0 // pred_region
    _
  $region25: #{simclr_encoder_forward.1} parent=0 // pred_fallthru
    _
  // Predicated region
  $region26: #{simclr_encoder_forward.1} parent=0 // pred_check
    _
  $region27: #{simclr_encoder_forward.1} parent=0 // pred_check_branch
    %28 = sbr.rel (0) target = $region29
  $region28: #{simclr_encoder_forward.1} parent=0 // pred_region
    _
  $region29: #{simclr_encoder_forward.1} parent=0 // pred_fallthru
    _
  // Predicated region
  $region30: #{simclr_encoder_forward.1} parent=0 // pred_check
    _
  $region31: #{simclr_encoder_forward.1} parent=0 // pred_check_branch
    %30 = sbr.rel (0) target = $region33
  $region32: #{simclr_encoder_forward.1} parent=0 // pred_region
    _
  $region33: #{simclr_encoder_forward.1} parent=0 // pred_fallthru
    _
  %v32 = vld [vmem:[%s0] sm:$0xf]
  %v33 = vld [vmem:[%s0 + $0x4] sm:$0xf]
  %v34 = vld [vmem:[%s0 + $0x8] sm:$0xf]
  %v35 = vld [vmem:[%s0 + $0xc] sm:$0xf]
  %v36 = vld [vmem:[%s0 + $0x10] sm:$0xf]
  %v37 = vld [vmem:[%s0 + $0x14] sm:$0xf]
  %v38 = vld [vmem:[%s2] sm:$0xf]
  %v39 = vld [vmem:[%s2 + $0x4] sm:$0xf]
  %v40 = vld [vmem:[%s2 + $0x8] sm:$0xf]
  %v41 = vld [vmem:[%s2 + $0xc] sm:$0xf]
  %v42 = vld [vmem:[%s3] sm:$0x1]
  %v44 = vlaneseq
  %v45 = vshrl.u32 %v44, 7
  %v46 = vsub.s32 0, %v45
  %v47 = vrot.slane %v42, %v46
  %v55 = vunpack.c.l.b16 %v32
  %v56 = vunpack.c.l.b16 %v33
  %v57 = vunpack.c.l.b16 %v34
  %v58 = vunpack.c.l.b16 %v35
  %v59 = vunpack.c.l.b16 %v36
  %v60 = vunpack.c.l.b16 %v37
  %v61 = vpack.c.b16 %v56, %v55
  %v62 = vpack.c.b16 %v58, %v57
  %v63 = vpack.c.b16 %v60, %v59
  %v68 = vunpack.c.l.b16 %v38
  %v69 = vunpack.c.l.b16 %v39
  %v70 = vunpack.c.l.b16 %v40
  %v71 = vunpack.c.l.b16 %v41
  %v72 = vpack.c.b16 %v69, %v68
  %v73 = vpack.c.b16 %v71, %v70
  %vm76 = vcmask 261120
  %v78 = vsel %vm76, %v61, 0
  %v81 = vsel %vm76, %v62, 0
  %v84 = vsel %vm76, %v63, 0
  %86 = vmatprep.subr.bf16.mxu0 0
  %87 = vmatpush1.bf16.msra.mxu0 %v72
  %88 = vmatprep.subr.bf16.mxu0 0
  %89 = vmatpush1.bf16.msra.mxu0 %v73
  %90 = vmatprep.subr.bf16.mxu0 0
  %91 = vmatpush1.bf16.msra.mxu0 0
  %92 = vmatprep.subr.bf16.mxu0 0
  %93 = vmatpush1.bf16.msra.mxu0 0
  %94 = vmatprep.subr.bf16.mxu0 0
  %95 = vmatpush1.bf16.msra.mxu0 0
  %96 = vmatprep.subr.bf16.mxu0 0
  %97 = vmatpush1.bf16.msra.mxu0 0
  %98 = vmatprep.subr.bf16.mxu0 0
  %99 = vmatpush1.bf16.msra.mxu0 0
  %100 = vmatprep.subr.bf16.mxu0 0
  %101 = vmatpush1.bf16.msra.mxu0 0
  %102 = vmatprep.subr.bf16.mxu0 0
  %103 = vmatpush1.bf16.msra.mxu0 0
  %104 = vmatprep.subr.bf16.mxu0 0
  %105 = vmatpush1.bf16.msra.mxu0 0
  %106 = vmatprep.subr.bf16.mxu0 0
  %107 = vmatpush1.bf16.msra.mxu0 0
  %108 = vmatprep.subr.bf16.mxu0 0
  %109 = vmatpush1.bf16.msra.mxu0 0
  %110 = vmatprep.subr.bf16.mxu0 0
  %111 = vmatpush1.bf16.msra.mxu0 0
  %112 = vmatprep.subr.bf16.mxu0 0
  %113 = vmatpush1.bf16.msra.mxu0 0
  %114 = vmatprep.subr.bf16.mxu0 0
  %115 = vmatpush1.bf16.msra.mxu0 0
  %116 = vmatprep.subr.bf16.mxu0 0
  %117 = vmatpush1.bf16.msra.mxu0 0
  %118 = vmatprep.mubr.bf16.mxu0 0
  %119 = vmatmul.mubr.bf16.gmra.mrb[0].mxu0 %v78
  %v120 = vpop.f32.mrb[0].mxu0
  %v121 = vadd.f32 %v47, %v120
  %v122 = vpop.f32.mrb[0].mxu0
  %v123 = vpop.f32.mrb[0].mxu0
  %v124 = vadd.f32 %v47, %v123
  %v125 = vpop.f32.mrb[0].mxu0
  %126 = vmatprep.mubr.bf16.mxu0 0
  %127 = vmatmul.mubr.bf16.gmra.mrb[0].mxu0 %v81
  %v128 = vpop.f32.mrb[0].mxu0
  %v129 = vadd.f32 %v47, %v128
  %v130 = vpop.f32.mrb[0].mxu0
  %v131 = vpop.f32.mrb[0].mxu0
  %v132 = vadd.f32 %v47, %v131
  %v133 = vpop.f32.mrb[0].mxu0
  %134 = vmatprep.mubr.bf16.mxu0 0
  %135 = vmatmul.mubr.bf16.gmra.mrb[0].mxu0 %v84
  %v136 = vpop.f32.mrb[0].mxu0
  %v137 = vadd.f32 %v47, %v136
  %v138 = vpop.f32.mrb[0].mxu0
  %v139 = vpop.f32.mrb[0].mxu0
  %v140 = vadd.f32 %v47, %v139
  %v141 = vpop.f32.mrb[0].mxu0
  %142 = vdwg.mxu0
  %v143 = vmax.f32 %v121, 0.0
  %v144 = vmax.f32 %v124, 0.0
  %v145 = vmax.f32 %v129, 0.0
  %v146 = vmax.f32 %v132, 0.0
  %v147 = vmax.f32 %v137, 0.0
  %v148 = vmax.f32 %v140, 0.0
  %v149 = vld [vmem:[%s1] sm:$0xf]
  %vm150 = vcmask 392192
  %v152 = vsel %vm150, %v149, 0
  %154 = vmatprep.subr.mxu0 0.0
  %155 = vmatpush1.msra.mxu0 %v143
  %156 = vmatprep.subr.mxu0 0.0
  %157 = vmatpush1.msra.mxu0 %v144
  %158 = vmatprep.subr.mxu0 0.0
  %159 = vmatpush1.msra.mxu0 %v145
  %160 = vmatprep.subr.mxu0 0.0
  %161 = vmatpush1.msra.mxu0 %v146
  %162 = vmatprep.subr.mxu0 0.0
  %163 = vmatpush1.msra.mxu0 %v147
  %164 = vmatprep.subr.mxu0 0.0
  %165 = vmatpush1.msra.mxu0 %v148
  %166 = vmatprep.subr.mxu0 0.0
  %167 = vmatpush1.msra.mxu0 0.0
  %168 = vmatprep.subr.mxu0 0.0
  %169 = vmatpush1.msra.mxu0 0.0
  %170 = vmatprep.subr.mxu0 0.0
  %171 = vmatpush1.msra.mxu0 0.0
  %172 = vmatprep.subr.mxu0 0.0
  %173 = vmatpush1.msra.mxu0 0.0
  %174 = vmatprep.subr.mxu0 0.0
  %175 = vmatpush1.msra.mxu0 0.0
  %176 = vmatprep.subr.mxu0 0.0
  %177 = vmatpush1.msra.mxu0 0.0
  %178 = vmatprep.subr.mxu0 0.0
  %179 = vmatpush1.msra.mxu0 0.0
  %180 = vmatprep.subr.mxu0 0.0
  %181 = vmatpush1.msra.mxu0 0.0
  %182 = vmatprep.subr.mxu0 0.0
  %183 = vmatpush1.msra.mxu0 0.0
  %184 = vmatprep.subr.mxu0 0.0
  %185 = vmatpush1.msra.mxu0 0.0
  %186 = vmatprep.subr.mxu0 0.0
  %187 = vmatpush1.msra.mxu0 0.0
  %188 = vmatprep.subr.mxu0 0.0
  %189 = vmatpush1.msra.mxu0 0.0
  %190 = vmatprep.subr.mxu0 0.0
  %191 = vmatpush1.msra.mxu0 0.0
  %192 = vmatprep.subr.mxu0 0.0
  %193 = vmatpush1.msra.mxu0 0.0
  %194 = vmatprep.subr.mxu0 0.0
  %195 = vmatpush1.msra.mxu0 0.0
  %196 = vmatprep.subr.mxu0 0.0
  %197 = vmatpush1.msra.mxu0 0.0
  %198 = vmatprep.subr.mxu0 0.0
  %199 = vmatpush1.msra.mxu0 0.0
  %200 = vmatprep.subr.mxu0 0.0
  %201 = vmatpush1.msra.mxu0 0.0
  %202 = vmatprep.subr.mxu0 0.0
  %203 = vmatpush1.msra.mxu0 0.0
  %204 = vmatprep.subr.mxu0 0.0
  %205 = vmatpush1.msra.mxu0 0.0
  %206 = vmatprep.subr.mxu0 0.0
  %207 = vmatpush1.msra.mxu0 0.0
  %208 = vmatprep.subr.mxu0 0.0
  %209 = vmatpush1.msra.mxu0 0.0
  %210 = vmatprep.subr.mxu0 0.0
  %211 = vmatpush1.msra.mxu0 0.0
  %212 = vmatprep.subr.mxu0 0.0
  %213 = vmatpush1.msra.mxu0 0.0
  %214 = vmatprep.subr.mxu0 0.0
  %215 = vmatpush1.msra.mxu0 0.0
  %216 = vmatprep.subr.mxu0 0.0
  %217 = vmatpush1.msra.mxu0 0.0
  %218 = vmatprep.mubr.f32.mxu0 0.0
  %219 = vmatmul.mubr.f32.gmra.mrb[0].mxu0 %v152
  %v220 = vpop.f32.mrb[0].mxu0
  %v221 = vadd.f32 0.0, %v220
  %v222 = vpop.f32.mrb[0].mxu0
  %223 = vdwg.mxu0
  %224 = vst [vmem:[%s8] sm:$0xf] %v221
  %v225 = vpack.c.bf16 %v221, %v221
  %v226 = vld [vmem:[%s4] sm:$0xf]
  %v227 = vld [vmem:[%s4 + $0x4] sm:$0xf]
  %v228 = vld [vmem:[%s4 + $0x8] sm:$0xf]
  %v229 = vld [vmem:[%s4 + $0xc] sm:$0xf]
  %v230 = vld [vmem:[%s4 + $0x10] sm:$0xf]
  %v231 = vld [vmem:[%s4 + $0x14] sm:$0xf]
  %v232 = vld [vmem:[%s4 + $0x18] sm:$0xf]
  %v233 = vld [vmem:[%s4 + $0x1c] sm:$0xf]
  %v234 = vld [vmem:[%s4 + $0x20] sm:$0xf]
  %v235 = vld [vmem:[%s4 + $0x24] sm:$0xf]
  %v236 = vld [vmem:[%s4 + $0x28] sm:$0xf]
  %v237 = vld [vmem:[%s4 + $0x2c] sm:$0xf]
  %v238 = vld [vmem:[%s4 + $0x30] sm:$0xf]
  %v239 = vld [vmem:[%s4 + $0x34] sm:$0xf]
  %v240 = vld [vmem:[%s4 + $0x38] sm:$0xf]
  %v241 = vld [vmem:[%s4 + $0x3c] sm:$0xf]
  %v242 = vld [vmem:[%s5] sm:$0x1]
  %v244 = vlaneseq
  %v245 = vshrl.u32 %v244, 7
  %v246 = vsub.s32 0, %v245
  %v247 = vrot.slane %v242, %v246
  %v265 = vunpack.c.l.b16 %v226
  %v266 = vunpack.c.l.b16 %v227
  %v267 = vunpack.c.l.b16 %v228
  %v268 = vunpack.c.l.b16 %v229
  %v269 = vunpack.c.l.b16 %v230
  %v270 = vunpack.c.l.b16 %v231
  %v271 = vunpack.c.l.b16 %v232
  %v272 = vunpack.c.l.b16 %v233
  %v273 = vunpack.c.l.b16 %v234
  %v274 = vunpack.c.l.b16 %v235
  %v275 = vunpack.c.l.b16 %v236
  %v276 = vunpack.c.l.b16 %v237
  %v277 = vunpack.c.l.b16 %v238
  %v278 = vunpack.c.l.b16 %v239
  %v279 = vunpack.c.l.b16 %v240
  %v280 = vunpack.c.l.b16 %v241
  %v281 = vpack.c.b16 %v266, %v265
  %v282 = vpack.c.b16 %v268, %v267
  %v283 = vpack.c.b16 %v270, %v269
  %v284 = vpack.c.b16 %v272, %v271
  %v285 = vpack.c.b16 %v274, %v273
  %v286 = vpack.c.b16 %v276, %v275
  %v287 = vpack.c.b16 %v278, %v277
  %v288 = vpack.c.b16 %v280, %v279
  %297 = vmatprep.subr.bf16.mxu0 0
  %298 = vmatpush1.bf16.msra.mxu0 %v281
  %299 = vmatprep.subr.bf16.mxu0 0
  %300 = vmatpush1.bf16.msra.mxu0 %v282
  %301 = vmatprep.subr.bf16.mxu0 0
  %302 = vmatpush1.bf16.msra.mxu0 %v283
  %303 = vmatprep.subr.bf16.mxu0 0
  %304 = vmatpush1.bf16.msra.mxu0 %v284
  %305 = vmatprep.subr.bf16.mxu0 0
  %306 = vmatpush1.bf16.msra.mxu0 %v285
  %307 = vmatprep.subr.bf16.mxu0 0
  %308 = vmatpush1.bf16.msra.mxu0 %v286
  %309 = vmatprep.subr.bf16.mxu0 0
  %310 = vmatpush1.bf16.msra.mxu0 %v287
  %311 = vmatprep.subr.bf16.mxu0 0
  %312 = vmatpush1.bf16.msra.mxu0 %v288
  %313 = vmatprep.subr.bf16.mxu0 0
  %314 = vmatpush1.bf16.msra.mxu0 0
  %315 = vmatprep.subr.bf16.mxu0 0
  %316 = vmatpush1.bf16.msra.mxu0 0
  %317 = vmatprep.subr.bf16.mxu0 0
  %318 = vmatpush1.bf16.msra.mxu0 0
  %319 = vmatprep.subr.bf16.mxu0 0
  %320 = vmatpush1.bf16.msra.mxu0 0
  %321 = vmatprep.subr.bf16.mxu0 0
  %322 = vmatpush1.bf16.msra.mxu0 0
  %323 = vmatprep.subr.bf16.mxu0 0
  %324 = vmatpush1.bf16.msra.mxu0 0
  %325 = vmatprep.subr.bf16.mxu0 0
  %326 = vmatpush1.bf16.msra.mxu0 0
  %327 = vmatprep.subr.bf16.mxu0 0
  %328 = vmatpush1.bf16.msra.mxu0 0
  %329 = vmatprep.mubr.bf16.mxu0 0
  %330 = vmatmul.mubr.bf16.gmra.mrb[0].mxu0 %v225
  %v331 = vpop.f32.mrb[0].mxu0
  %v332 = vadd.f32 %v247, %v331
  %v333 = vpop.f32.mrb[0].mxu0
  %v334 = vpop.f32.mrb[0].mxu0
  %v335 = vpop.f32.mrb[0].mxu0
  %336 = vdwg.mxu0
  %v337 = vmax.f32 %v332, 0.0
  %v338 = vpack.c.bf16 %v337, %v337
  %v339 = vld [vmem:[%s6] sm:$0xf]
  %v340 = vld [vmem:[%s6 + $0x4] sm:$0xf]
  %v341 = vld [vmem:[%s7] sm:$0x1]
  %v343 = vlaneseq
  %v344 = vshrl.u32 %v343, 7
  %v345 = vsub.s32 0, %v344
  %v346 = vrot.slane %v341, %v345
  %v350 = vunpack.c.l.b16 %v339
  %v351 = vunpack.c.l.b16 %v340
  %v352 = vpack.c.b16 %v351, %v350
  %vm354 = vcmask 130048
  %v356 = vsel %vm354, %v338, 0
  %358 = vmatprep.subr.bf16.mxu0 0
  %359 = vmatpush1.bf16.msra.mxu0 %v352
  %360 = vmatprep.subr.bf16.mxu0 0
  %361 = vmatpush1.bf16.msra.mxu0 0
  %362 = vmatprep.subr.bf16.mxu0 0
  %363 = vmatpush1.bf16.msra.mxu0 0
  %364 = vmatprep.subr.bf16.mxu0 0
  %365 = vmatpush1.bf16.msra.mxu0 0
  %366 = vmatprep.subr.bf16.mxu0 0
  %367 = vmatpush1.bf16.msra.mxu0 0
  %368 = vmatprep.subr.bf16.mxu0 0
  %369 = vmatpush1.bf16.msra.mxu0 0
  %370 = vmatprep.subr.bf16.mxu0 0
  %371 = vmatpush1.bf16.msra.mxu0 0
  %372 = vmatprep.subr.bf16.mxu0 0
  %373 = vmatpush1.bf16.msra.mxu0 0
  %374 = vmatprep.subr.bf16.mxu0 0
  %375 = vmatpush1.bf16.msra.mxu0 0
  %376 = vmatprep.subr.bf16.mxu0 0
  %377 = vmatpush1.bf16.msra.mxu0 0
  %378 = vmatprep.subr.bf16.mxu0 0
  %379 = vmatpush1.bf16.msra.mxu0 0
  %380 = vmatprep.subr.bf16.mxu0 0
  %381 = vmatpush1.bf16.msra.mxu0 0
  %382 = vmatprep.subr.bf16.mxu0 0
  %383 = vmatpush1.bf16.msra.mxu0 0
  %384 = vmatprep.subr.bf16.mxu0 0
  %385 = vmatpush1.bf16.msra.mxu0 0
  %386 = vmatprep.subr.bf16.mxu0 0
  %387 = vmatpush1.bf16.msra.mxu0 0
  %388 = vmatprep.subr.bf16.mxu0 0
  %389 = vmatpush1.bf16.msra.mxu0 0
  %390 = vmatprep.mubr.bf16.mxu0 0
  %391 = vmatmul.mubr.bf16.gmra.mrb[0].mxu0 %v356
  %v392 = vpop.f32.mrb[0].mxu0
  %v393 = vadd.f32 %v346, %v392
  %v394 = vpop.f32.mrb[0].mxu0
  %v395 = vpop.f32.mrb[0].mxu0
  %v396 = vpop.f32.mrb[0].mxu0
  %397 = vdwg.mxu0
  %398 = vst [vmem:[%s9] sm:$0xf] %v393
  // Predicated region
  $region34: #{simclr_encoder_forward.1} parent=0 // pred_check
    _
  $region35: #{simclr_encoder_forward.1} parent=0 // pred_check_branch
    %400 = sbr.rel (0) target = $region37
  $region36: #{simclr_encoder_forward.1} parent=0 // pred_region
    _
  $region37: #{simclr_encoder_forward.1} parent=0 // pred_fallthru
    _
  // Predicated region
  $region38: #{simclr_encoder_forward.1} parent=0 // pred_check
    _
  $region39: #{simclr_encoder_forward.1} parent=0 // pred_check_branch
    %402 = sbr.rel (0) target = $region41
  $region40: #{simclr_encoder_forward.1} parent=0 // pred_region
    _
  $region41: #{simclr_encoder_forward.1} parent=0 // pred_fallthru
    _
  // Predicated region
  $region42: #{simclr_encoder_forward.1} parent=0 // pred_check
    _
  $region43: #{simclr_encoder_forward.1} parent=0 // pred_check_branch
    %404 = sbr.rel (0) target = $region45
  $region44: #{simclr_encoder_forward.1} parent=0 // pred_region
    _
  $region45: #{simclr_encoder_forward.1} parent=0 // pred_fallthru
    _
  // Predicated region
  $region46: #{simclr_encoder_forward.1} parent=0 // pred_check
    _
  $region47: #{simclr_encoder_forward.1} parent=0 // pred_check_branch
    %406 = sbr.rel (0) target = $region49
  $region48: #{simclr_encoder_forward.1} parent=0 // pred_region
    _
  $region49: #{simclr_encoder_forward.1} parent=0 // pred_fallthru
    _

</llo_original>
